<compile_context>
chip_gen: v5e
topology: v5e:2x2
jax: 0.10.0
libtpu: 0.0.40
codegen_flags: <defaults>
</compile_context>

<pallas_src>
import jax
import jax.numpy as jnp
from jax.experimental import pallas as pl
from jax.experimental.pallas import tpu as pltpu


# ---------------------------------------------------------------------------
# Fused kernel: conv3x3 + bias + ReLU + 2x2/2 maxpool + FC for one batch item
# ---------------------------------------------------------------------------
def fused_cnn_kernel(patches_ref, wc_ref, bc_ref, wf_ref, bf_ref, out_ref):
    """All refs are VMEM blocks for one grid step (= one batch element).

    patches_ref : (1, 4, 27, P)  im2col slabs, one per 2x2 pool tap (h2,w2);
                                 rows = (ky,kx,cin), lanes = pooled pos (h1,w1)
    wc_ref      : (32, 27)       conv weight, cout x (ky,kx,cin)
    bc_ref      : (32, 1)        conv bias
    wf_ref      : (10, 32, P)    fc weight in PyTorch (c,h,w)-flatten order
    bf_ref      : (10, 1)        fc bias
    out_ref     : (1, 10, 1)     logits for this batch element
    """
    wc = wc_ref[...]                                              # (32, 27)

    # 2x2 max pool as a running max over the four pool-tap matmuls.  Exact:
    # the bias is constant per channel across the pool window and ReLU is
    # monotone, so max-then-(bias, ReLU) == pool(ReLU(conv + bias)).
    acc = jnp.dot(wc, patches_ref[0, 0], preferred_element_type=jnp.float32)
    for g in range(1, 4):
        acc = jnp.maximum(
            acc,
            jnp.dot(wc, patches_ref[0, g], preferred_element_type=jnp.float32))
    pooled = jnp.maximum(acc + bc_ref[...], 0.0)                  # (32, P) = (c, p)

    # FC: logits[k] = sum_{c,p} pooled[c,p] * wf[k,c,p] + bf[k].
    # The contraction pairs the channel axis on both operands, so a single
    # MXU matmul would need an in-kernel flatten; the fp32 VPU multiply plus
    # two lane reductions below are exact and tiny (10*32*P MACs).
    prod = wf_ref[...] * pooled[None, :, :]                       # (10, 32, P)
    logits = jnp.sum(jnp.sum(prod, axis=-1), axis=-1, keepdims=True)  # (10, 1)
    out_ref[0] = logits + bf_ref[...]


# ---------------------------------------------------------------------------
# Parameter repack (one-time, hoisted out of the per-forward path)
# ---------------------------------------------------------------------------
def prepare_params(conv_w, conv_b, fc_w, fc_b, pooled_hw=(16, 16)):
    Cout, Cin = conv_w.shape[0], conv_w.shape[1]
    Hp, Wp = pooled_hw
    # (O, I, 3, 3) -> (O, ky, kx, I) -> (O, 27): column order (ky, kx, cin).
    wc = jnp.transpose(conv_w, (0, 2, 3, 1)).reshape(Cout, 9 * Cin)
    bc = conv_b.reshape(Cout, 1)
    # PyTorch flattens pooled activations as (c, h, w); the kernel's pooled
    # activation is (c, p) with p = h*Wp + w, so a plain reshape suffices.
    n_cls = fc_w.shape[0]
    wf = fc_w.reshape(n_cls, Cout, Hp * Wp)        # (10, 32, 256)
    bf = fc_b.reshape(n_cls, 1)
    return wc, bc, wf, bf


# ---------------------------------------------------------------------------
# Forward pass wrapper
# ---------------------------------------------------------------------------
def cnn_forward(x, wc, bc, wf, bf):
    """x: (B, 3, H, W) NCHW float32 (PyTorch convention)."""
    B, Cin, H, W = x.shape
    Cout, K = wc.shape                       # (32, 27)
    n_cls = wf.shape[0]
    Hp, Wp = H // 2, W // 2
    P = Hp * Wp

    # ---- XLA glue: lane-dense im2col slabs, grouped by 2x2 pool tap --------
    # patches[b, g=(h2*2+w2), (ky*3+kx)*Cin + c, h1*Wp + w1]
    #   = x_pad[b, c, 2*h1 + h2 + ky, 2*w1 + w2 + kx]
    # Stride-2 slices only; no large relayout transpose.
    x_pad = jnp.pad(x, ((0, 0), (0, 0), (1, 1), (1, 1)))        # (B, Cin, H+2, W+2)
    groups = []
    for h2 in range(2):
        for w2 in range(2):
            taps = [
                x_pad[:, :, h2 + ky:h2 + ky + H:2, w2 + kx:w2 + kx + W:2]
                .reshape(B, Cin, P)
                for ky in range(3) for kx in range(3)
            ]
            groups.append(jnp.concatenate(taps, axis=1))        # (B, 27, P)
    patches = jnp.stack(groups, axis=1)                         # (B, 4, 27, P)

    # ---- single fused pallas_call, gridded over the batch ------------------
    out = pl.pallas_call(
        fused_cnn_kernel,
        out_shape=jax.ShapeDtypeStruct((B, n_cls, 1), jnp.float32),
        grid=(B,),
        in_specs=[
            pl.BlockSpec((1, 4, K, P), lambda b: (b, 0, 0, 0)),    # patches
            pl.BlockSpec((Cout, K), lambda b: (0, 0)),             # conv weight
            pl.BlockSpec((Cout, 1), lambda b: (0, 0)),             # conv bias
            pl.BlockSpec((n_cls, Cout, P), lambda b: (0, 0, 0)),   # fc weight
            pl.BlockSpec((n_cls, 1), lambda b: (0, 0)),            # fc bias
        ],
        out_specs=pl.BlockSpec((1, n_cls, 1), lambda b: (b, 0, 0)),
        compiler_params=pltpu.CompilerParams(
            dimension_semantics=("parallel",),     # shards over v7x's two TCs
            vmem_limit_bytes=32 * 1024 * 1024),
    )(patches, wc, bc, wf, bf)

    return out.reshape(B, n_cls)


# ---------------------------------------------------------------------------
# Pure-JAX reference (mirrors the PyTorch forward exactly)
# ---------------------------------------------------------------------------
def cnn_reference(x, conv_w, conv_b, fc_w, fc_b):
    y = jax.lax.conv_general_dilated(
        x, conv_w, window_strides=(1, 1), padding="SAME",
        dimension_numbers=("NCHW", "OIHW", "NCHW"),
        precision=jax.lax.Precision.HIGHEST)
    y = y + conv_b[None, :, None, None]
    y = jnp.maximum(y, 0.0)
    B, C, H, W = y.shape
    y = y.reshape(B, C, H // 2, 2, W // 2, 2).max(axis=(3, 5))   # MaxPool2d(2,2)
    y = y.reshape(B, -1)                                          # view(-1, 32*16*16)
    return jnp.dot(y, fc_w.T, precision=jax.lax.Precision.HIGHEST) + fc_b


# ---------------------------------------------------------------------------
if __name__ == "__main__":
    key = jax.random.PRNGKey(0)
    k1, k2, k3, k4, kx = jax.random.split(key, 5)

    # Deterministic synthetic parameters (shapes from the module's __init__).
    conv_w = jax.random.normal(k1, (32, 3, 3, 3), jnp.float32) * 0.1   # Conv2d(3,32,3)
    conv_b = jax.random.normal(k2, (32,), jnp.float32) * 0.1
    fc_w = jax.random.normal(k3, (10, 32 * 16 * 16), jnp.float32) * 0.01  # Linear(8192,10)
    fc_b = jax.random.normal(k4, (10,), jnp.float32) * 0.1

    # fc1's 32*16*16 input pins the spatial size to 32x32 (CIFAR-10).
    x = jax.random.normal(kx, (2, 3, 32, 32), jnp.float32)

    # One-time parameter repack, outside the per-step forward.
    wc, bc, wf, bf = prepare_params(conv_w, conv_b, fc_w, fc_b, pooled_hw=(16, 16))

    out = jax.jit(cnn_forward)(x, wc, bc, wf, bf)
    out = jax.block_until_ready(out)

    ref = cnn_reference(x, conv_w, conv_b, fc_w, fc_b)
    assert out.shape == (2, 10), out.shape
    assert jnp.allclose(out, ref, rtol=1e-3, atol=1e-3), (
        float(jnp.max(jnp.abs(out - ref))))

    print("KERNEL_OK")
</pallas_src>

<mosaic_0001>
module attributes {stable_mosaic.version = 11 : i64} {
  func.func @fused_cnn_kernel(%arg0: i32, %arg1: memref<1x4x27x256xf32, #tpu.memory_space<vmem>>, %arg2: memref<32x27xf32, #tpu.memory_space<vmem>>, %arg3: memref<32x1xf32, #tpu.memory_space<vmem>>, %arg4: memref<10x32x256xf32, #tpu.memory_space<vmem>>, %arg5: memref<10x1xf32, #tpu.memory_space<vmem>>, %arg6: memref<1x10x1xf32, #tpu.memory_space<vmem>>) attributes {dimension_semantics = [#tpu.dimension_semantics<parallel>], iteration_bounds = array<i64: 2>, scalar_prefetch = 0 : i64, scratch_operands = 0 : i64, tpu.core_type = #tpu.core_type<tc>, window_params = [{transform_indices = @transform_0, window_bounds = array<i64: 1, 4, 27, 256>}, {pipeline_mode = #tpu.pipeline_mode<synchronous>, transform_indices = @transform_1, window_bounds = array<i64: 32, 27>}, {pipeline_mode = #tpu.pipeline_mode<synchronous>, transform_indices = @transform_2, window_bounds = array<i64: 32, 1>}, {pipeline_mode = #tpu.pipeline_mode<synchronous>, transform_indices = @transform_3, window_bounds = array<i64: 10, 32, 256>}, {pipeline_mode = #tpu.pipeline_mode<synchronous>, transform_indices = @transform_4, window_bounds = array<i64: 10, 1>}, {transform_indices = @transform_5, window_bounds = array<i64: 1, 10, 1>}]} {
    %c0 = arith.constant 0 : index
    %c0_0 = arith.constant 0 : index
    %0 = vector.load %arg2[%c0, %c0_0] : memref<32x27xf32, #tpu.memory_space<vmem>>, vector<32x27xf32>
    %c0_1 = arith.constant 0 : index
    %c0_2 = arith.constant 0 : index
    %c0_3 = arith.constant 0 : index
    %c0_4 = arith.constant 0 : index
    %1 = vector.load %arg1[%c0_1, %c0_2, %c0_3, %c0_4] : memref<1x4x27x256xf32, #tpu.memory_space<vmem>>, vector<1x1x27x256xf32>
    %2 = vector.shape_cast %1 : vector<1x1x27x256xf32> to vector<27x256xf32>
    %cst = arith.constant dense<0.000000e+00> : vector<32x256xf32>
    %3 = tpu.matmul %0, %2, %cst {dimension_numbers = #tpu.dot_dimension_numbers<[1], [0], [0], [1], [0, 0, 1, 1], [], []>} : vector<32x27xf32>, vector<27x256xf32>, vector<32x256xf32> -> vector<32x256xf32>
    %c0_5 = arith.constant 0 : index
    %c1 = arith.constant 1 : index
    %c0_6 = arith.constant 0 : index
    %c0_7 = arith.constant 0 : index
    %4 = vector.load %arg1[%c0_5, %c1, %c0_6, %c0_7] : memref<1x4x27x256xf32, #tpu.memory_space<vmem>>, vector<1x1x27x256xf32>
    %5 = vector.shape_cast %4 : vector<1x1x27x256xf32> to vector<27x256xf32>
    %cst_8 = arith.constant dense<0.000000e+00> : vector<32x256xf32>
    %6 = tpu.matmul %0, %5, %cst_8 {dimension_numbers = #tpu.dot_dimension_numbers<[1], [0], [0], [1], [0, 0, 1, 1], [], []>} : vector<32x27xf32>, vector<27x256xf32>, vector<32x256xf32> -> vector<32x256xf32>
    %7 = arith.maximumf %3, %6 : vector<32x256xf32>
    %c0_9 = arith.constant 0 : index
    %c2 = arith.constant 2 : index
    %c0_10 = arith.constant 0 : index
    %c0_11 = arith.constant 0 : index
    %8 = vector.load %arg1[%c0_9, %c2, %c0_10, %c0_11] : memref<1x4x27x256xf32, #tpu.memory_space<vmem>>, vector<1x1x27x256xf32>
    %9 = vector.shape_cast %8 : vector<1x1x27x256xf32> to vector<27x256xf32>
    %cst_12 = arith.constant dense<0.000000e+00> : vector<32x256xf32>
    %10 = tpu.matmul %0, %9, %cst_12 {dimension_numbers = #tpu.dot_dimension_numbers<[1], [0], [0], [1], [0, 0, 1, 1], [], []>} : vector<32x27xf32>, vector<27x256xf32>, vector<32x256xf32> -> vector<32x256xf32>
    %11 = arith.maximumf %7, %10 : vector<32x256xf32>
    %c0_13 = arith.constant 0 : index
    %c3 = arith.constant 3 : index
    %c0_14 = arith.constant 0 : index
    %c0_15 = arith.constant 0 : index
    %12 = vector.load %arg1[%c0_13, %c3, %c0_14, %c0_15] : memref<1x4x27x256xf32, #tpu.memory_space<vmem>>, vector<1x1x27x256xf32>
    %13 = vector.shape_cast %12 : vector<1x1x27x256xf32> to vector<27x256xf32>
    %cst_16 = arith.constant dense<0.000000e+00> : vector<32x256xf32>
    %14 = tpu.matmul %0, %13, %cst_16 {dimension_numbers = #tpu.dot_dimension_numbers<[1], [0], [0], [1], [0, 0, 1, 1], [], []>} : vector<32x27xf32>, vector<27x256xf32>, vector<32x256xf32> -> vector<32x256xf32>
    %15 = arith.maximumf %11, %14 : vector<32x256xf32>
    %c0_17 = arith.constant 0 : index
    %c0_18 = arith.constant 0 : index
    %16 = vector.load %arg3[%c0_17, %c0_18] : memref<32x1xf32, #tpu.memory_space<vmem>>, vector<32x1xf32>
    %17 = vector.broadcast %16 : vector<32x1xf32> to vector<32x256xf32>
    %18 = arith.addf %15, %17 : vector<32x256xf32>
    %cst_19 = arith.constant 0.000000e+00 : f32
    %19 = vector.broadcast %cst_19 : f32 to vector<32x256xf32>
    %20 = arith.maximumf %18, %19 : vector<32x256xf32>
    %c0_20 = arith.constant 0 : index
    %c0_21 = arith.constant 0 : index
    %c0_22 = arith.constant 0 : index
    %21 = vector.load %arg4[%c0_20, %c0_21, %c0_22] : memref<10x32x256xf32, #tpu.memory_space<vmem>>, vector<10x32x256xf32>
    %22 = vector.shape_cast %20 : vector<32x256xf32> to vector<1x32x256xf32>
    %23 = vector.broadcast %22 : vector<1x32x256xf32> to vector<10x32x256xf32>
    %24 = arith.mulf %21, %23 : vector<10x32x256xf32>
    %cst_23 = arith.constant dense<0.000000e+00> : vector<10x32xf32>
    %25 = vector.multi_reduction <add>, %24, %cst_23 [2] : vector<10x32x256xf32> to vector<10x32xf32>
    %cst_24 = arith.constant dense<0.000000e+00> : vector<10xf32>
    %26 = vector.multi_reduction <add>, %25, %cst_24 [1] : vector<10x32xf32> to vector<10xf32>
    %27 = vector.shape_cast %26 : vector<10xf32> to vector<10x1xf32>
    %c0_25 = arith.constant 0 : index
    %c0_26 = arith.constant 0 : index
    %28 = vector.load %arg5[%c0_25, %c0_26] : memref<10x1xf32, #tpu.memory_space<vmem>>, vector<10x1xf32>
    %29 = arith.addf %27, %28 : vector<10x1xf32>
    %c0_27 = arith.constant 0 : index
    %c0_28 = arith.constant 0 : index
    %c0_29 = arith.constant 0 : index
    %30 = vector.load %arg6[%c0_27, %c0_28, %c0_29] : memref<1x10x1xf32, #tpu.memory_space<vmem>>, vector<1x10x1xf32>
    %31 = vector.shape_cast %30 : vector<1x10x1xf32> to vector<10x1xf32>
    %32 = vector.shape_cast %29 : vector<10x1xf32> to vector<1x10x1xf32>
    tpu.vector_store %arg6[%c0_27, %c0_28, %c0_29], %32 {strides = array<i32>} : memref<1x10x1xf32, #tpu.memory_space<vmem>>, vector<1x10x1xf32>,
    return
  }
  func.func @transform_0(%arg0: i32) -> (i32, i32, i32, i32) {
    %c0_i32 = arith.constant 0 : i32
    %c0_i32_0 = arith.constant 0 : i32
    %c0_i32_1 = arith.constant 0 : i32
    %c0_i32_2 = arith.constant 0 : i32
    return %arg0, %c0_i32, %c0_i32_0, %c0_i32_1 : i32, i32, i32, i32
  }
  func.func @transform_1(%arg0: i32) -> (i32, i32) {
    %c0_i32 = arith.constant 0 : i32
    %c0_i32_0 = arith.constant 0 : i32
    %c0_i32_1 = arith.constant 0 : i32
    return %c0_i32, %c0_i32_0 : i32, i32
  }
  func.func @transform_2(%arg0: i32) -> (i32, i32) {
    %c0_i32 = arith.constant 0 : i32
    %c0_i32_0 = arith.constant 0 : i32
    %c0_i32_1 = arith.constant 0 : i32
    return %c0_i32, %c0_i32_0 : i32, i32
  }
  func.func @transform_3(%arg0: i32) -> (i32, i32, i32) {
    %c0_i32 = arith.constant 0 : i32
    %c0_i32_0 = arith.constant 0 : i32
    %c0_i32_1 = arith.constant 0 : i32
    %c0_i32_2 = arith.constant 0 : i32
    return %c0_i32, %c0_i32_0, %c0_i32_1 : i32, i32, i32
  }
  func.func @transform_4(%arg0: i32) -> (i32, i32) {
    %c0_i32 = arith.constant 0 : i32
    %c0_i32_0 = arith.constant 0 : i32
    %c0_i32_1 = arith.constant 0 : i32
    return %c0_i32, %c0_i32_0 : i32, i32
  }
  func.func @transform_5(%arg0: i32) -> (i32, i32, i32) {
    %c0_i32 = arith.constant 0 : i32
    %c0_i32_0 = arith.constant 0 : i32
    %c0_i32_1 = arith.constant 0 : i32
    return %arg0, %c0_i32, %c0_i32_0 : i32, i32, i32
  }
}

</mosaic_0001>

<llo_original>
// kernel: cnn_forward.1
$region0: #{cnn_forward.1}
  #allocation0 [shape = 'u32[]', space=smem, size = 0x4, offset = 0x4, fixed_abs, tag = 'smem constant byte address 0x4 - core index']
  #allocation1 [shape = 'u32[72,128]{1,0:T(1,128)}', space=vmem, size = 0x9000, scoped, tag = 'internal scratch']
  %s0 = inlined_call_operand.vmem [shape: f32[2,4,27,256], index: 0, kind: input, shape index: {}]
  %s1 = inlined_call_operand.vmem [shape: f32[32,27], index: 1, kind: input, shape index: {}]
  %s2 = inlined_call_operand.vmem [shape: f32[32,1], index: 2, kind: input, shape index: {}]
  %s3 = inlined_call_operand.vmem [shape: f32[10,32,256], index: 3, kind: input, shape index: {}]
  %s4 = inlined_call_operand.vmem [shape: f32[10,1], index: 4, kind: input, shape index: {}]
  %s5 = inlined_call_operand.vmem [shape: f32[2,10,1], index: 5, kind: output, shape index: {}]
  %s6 = sld [smem:[#allocation0]]
  $region53: #{cnn_forward.1} parent=0
    _
  %s8 = ssub.s32 1, %s6
  %s9 = scalar_select 0, %s8, %s6
  loop: start=0, step=1, limit=4
  $region2: #{cnn_forward.1} parent=0 // loop_pre_header
    _
  $region3: #{cnn_forward.1} parent=0 // loop_header
    %s11 = sphi 0, %s15
    %p12 = scmp.ge.s32.totalorder %s11, 4
    %s21 = sphi 0, %s23
    %s24 = sphi 0, %s21
    %s25 = sphi 0, %s24
    %s41 = sphi 0, %s25
    %s45 = sphi 0, %s45
    %s47 = sphi 0, %s45
    %s48 = sphi 0, %s47
    %s62 = sphi 0, %s48
    %s66 = sphi 0, %s66
    %s68 = sphi 0, %s66
    %s69 = sphi 0, %s68
    %s83 = sphi 0, %s69
    %s87 = sphi 0, %s87
    %s89 = sphi 0, %s87
    %s90 = sphi 0, %s89
    %s104 = sphi 0, %s90
    %s108 = sphi 0, %s108
    %s110 = sphi 0, %s108
    %s111 = sphi 0, %s110
    %s125 = sphi 0, %s111
    %s131 = sphi 0, %s133
    %s134 = sphi 0, %s131
    %s135 = sphi 0, %s134
    %s151 = sphi 0, %s135
  $region4: #{cnn_forward.1} parent=0 // loop_header_branch
    %14 = sbr.rel (%p12) target = $region8
  $region5: #{cnn_forward.1} parent=0 // loop_body
    %s16 = ssub.s32 %s11, 1
    %s17 = ssub.s32 %s11, 2
    %s18 = sadd.s32 %s11, 1
    %s19 = ssub.s32 %s11, %s18
    %p20 = scmp.eq.s32.totalorder %s19, 0
    %s22 = sadd.s32 %s21, 1
    %s23 = scalar_select %p20, %s21, %s22
    %p26 = pneg %p20
    %p27 = scmp.eq.s32.totalorder %s11, 1
    %p28 = por %p26, %p27
    %p29 = scmp.ne.s32.totalorder %s21, %s24
    %p30 = scmp.eq.s32.totalorder %s11, 0
    %p31 = por %p29, %p30
    %p32 = scmp.ne.s32.totalorder %s21, %s24
    %p33 = scmp.eq.s32.totalorder %s16, 1
    %p34 = por %p32, %p33
    %p35 = scmp.ne.s32.totalorder %s24, %s25
    %p36 = scmp.eq.s32.totalorder %s16, 0
    %p37 = por %p35, %p36
    %p38 = scmp.ne.s32.totalorder %s24, %s25
    %p39 = scmp.eq.s32.totalorder %s17, 1
    %p40 = por %p38, %p39
    %p42 = scmp.ne.s32.totalorder %s25, %s41
    %p43 = scmp.eq.s32.totalorder %s17, 0
    %p44 = por %p42, %p43
    %s46 = sadd.s32 %s45, 1
    %p49 = scmp.eq.s32.totalorder %s11, 1
    %p50 = scmp.ne.s32.totalorder %s45, %s47
    %p51 = scmp.eq.s32.totalorder %s11, 0
    %p52 = por %p50, %p51
    %p53 = scmp.ne.s32.totalorder %s45, %s47
    %p54 = scmp.eq.s32.totalorder %s16, 1
    %p55 = por %p53, %p54
    %p56 = scmp.ne.s32.totalorder %s47, %s48
    %p57 = scmp.eq.s32.totalorder %s16, 0
    %p58 = por %p56, %p57
    %p59 = scmp.ne.s32.totalorder %s47, %s48
    %p60 = scmp.eq.s32.totalorder %s17, 1
    %p61 = por %p59, %p60
    %p63 = scmp.ne.s32.totalorder %s48, %s62
    %p64 = scmp.eq.s32.totalorder %s17, 0
    %p65 = por %p63, %p64
    %s67 = sadd.s32 %s66, 1
    %p70 = scmp.eq.s32.totalorder %s11, 1
    %p71 = scmp.ne.s32.totalorder %s66, %s68
    %p72 = scmp.eq.s32.totalorder %s11, 0
    %p73 = por %p71, %p72
    %p74 = scmp.ne.s32.totalorder %s66, %s68
    %p75 = scmp.eq.s32.totalorder %s16, 1
    %p76 = por %p74, %p75
    %p77 = scmp.ne.s32.totalorder %s68, %s69
    %p78 = scmp.eq.s32.totalorder %s16, 0
    %p79 = por %p77, %p78
    %p80 = scmp.ne.s32.totalorder %s68, %s69
    %p81 = scmp.eq.s32.totalorder %s17, 1
    %p82 = por %p80, %p81
    %p84 = scmp.ne.s32.totalorder %s69, %s83
    %p85 = scmp.eq.s32.totalorder %s17, 0
    %p86 = por %p84, %p85
    %s88 = sadd.s32 %s87, 1
    %p91 = scmp.eq.s32.totalorder %s11, 1
    %p92 = scmp.ne.s32.totalorder %s87, %s89
    %p93 = scmp.eq.s32.totalorder %s11, 0
    %p94 = por %p92, %p93
    %p95 = scmp.ne.s32.totalorder %s87, %s89
    %p96 = scmp.eq.s32.totalorder %s16, 1
    %p97 = por %p95, %p96
    %p98 = scmp.ne.s32.totalorder %s89, %s90
    %p99 = scmp.eq.s32.totalorder %s16, 0
    %p100 = por %p98, %p99
    %p101 = scmp.ne.s32.totalorder %s89, %s90
    %p102 = scmp.eq.s32.totalorder %s17, 1
    %p103 = por %p101, %p102
    %p105 = scmp.ne.s32.totalorder %s90, %s104
    %p106 = scmp.eq.s32.totalorder %s17, 0
    %p107 = por %p105, %p106
    %s109 = sadd.s32 %s108, 1
    %p112 = scmp.eq.s32.totalorder %s11, 1
    %p113 = scmp.ne.s32.totalorder %s108, %s110
    %p114 = scmp.eq.s32.totalorder %s11, 0
    %p115 = por %p113, %p114
    %p116 = scmp.ne.s32.totalorder %s108, %s110
    %p117 = scmp.eq.s32.totalorder %s16, 1
    %p118 = por %p116, %p117
    %p119 = scmp.ne.s32.totalorder %s110, %s111
    %p120 = scmp.eq.s32.totalorder %s16, 0
    %p121 = por %p119, %p120
    %p122 = scmp.ne.s32.totalorder %s110, %s111
    %p123 = scmp.eq.s32.totalorder %s17, 1
    %p124 = por %p122, %p123
    %p126 = scmp.ne.s32.totalorder %s111, %s125
    %p127 = scmp.eq.s32.totalorder %s17, 0
    %p128 = por %p126, %p127
    %s129 = ssub.s32 %s11, %s18
    %p130 = scmp.eq.s32.totalorder %s129, 0
    %s132 = sadd.s32 %s131, 1
    %s133 = scalar_select %p130, %s131, %s132
    %p136 = pneg %p130
    %p137 = scmp.eq.s32.totalorder %s11, 1
    %p138 = por %p136, %p137
    %p139 = scmp.ne.s32.totalorder %s131, %s134
    %p140 = scmp.eq.s32.totalorder %s11, 0
    %p141 = por %p139, %p140
    %p142 = scmp.ne.s32.totalorder %s131, %s134
    %p143 = scmp.eq.s32.totalorder %s16, 1
    %p144 = por %p142, %p143
    %p145 = scmp.ne.s32.totalorder %s134, %s135
    %p146 = scmp.eq.s32.totalorder %s16, 0
    %p147 = por %p145, %p146
    %p148 = scmp.ne.s32.totalorder %s134, %s135
    %p149 = scmp.eq.s32.totalorder %s17, 1
    %p150 = por %p148, %p149
    %p152 = scmp.ne.s32.totalorder %s135, %s151
    %p153 = scmp.eq.s32.totalorder %s17, 0
    %p154 = por %p152, %p153
    %p155 = scmp.le.s32.totalorder 1, %s11
    %p156 = scmp.lt.s32.totalorder %s11, 3
    %p157 = pnand %p155, %p156
    %p158 = pneg %p157
    // Predicated region
    $region9: #{cnn_forward.1} parent=5 // pred_check
      _
    $region10: #{cnn_forward.1} parent=5 // pred_check_branch
      %160 = sbr.rel (%p157) target = $region12
    $region11: #{cnn_forward.1} parent=5 // pred_region
      %s161 = ssub.s32 %s11, 1
      // Predicated region
      $region13: #{cnn_forward.1} parent=11 // pred_check
        %p162 = pneg %p58
      $region14: #{cnn_forward.1} parent=11 // pred_check_branch
        %164 = sbr.rel (%p162) target = $region16
      $region15: #{cnn_forward.1} parent=11 // pred_region
        _
      $region16: #{cnn_forward.1} parent=11 // pred_fallthru
        _
      // Predicated region
      $region17: #{cnn_forward.1} parent=11 // pred_check
        %p165 = pneg %p79
      $region18: #{cnn_forward.1} parent=11 // pred_check_branch
        %167 = sbr.rel (%p165) target = $region20
      $region19: #{cnn_forward.1} parent=11 // pred_region
        _
      $region20: #{cnn_forward.1} parent=11 // pred_fallthru
        _
      // Predicated region
      $region21: #{cnn_forward.1} parent=11 // pred_check
        %p168 = pneg %p100
      $region22: #{cnn_forward.1} parent=11 // pred_check_branch
        %170 = sbr.rel (%p168) target = $region24
      $region23: #{cnn_forward.1} parent=11 // pred_region
        _
      $region24: #{cnn_forward.1} parent=11 // pred_fallthru
        _
      // Predicated region
      $region25: #{cnn_forward.1} parent=11 // pred_check
        %p171 = pneg %p121
      $region26: #{cnn_forward.1} parent=11 // pred_check_branch
        %173 = sbr.rel (%p171) target = $region28
      $region27: #{cnn_forward.1} parent=11 // pred_region
        _
      $region28: #{cnn_forward.1} parent=11 // pred_fallthru
        _
    $region12: #{cnn_forward.1} parent=5 // pred_fallthru
      _
    %p174 = scmp.lt.s32.totalorder %s11, 2
    // Predicated region
    $region29: #{cnn_forward.1} parent=5 // pred_check
      %p175 = pneg %p174
    $region30: #{cnn_forward.1} parent=5 // pred_check_branch
      %177 = sbr.rel (%p175) target = $region32
    $region31: #{cnn_forward.1} parent=5 // pred_region
      // Predicated region
      $region33: #{cnn_forward.1} parent=31 // pred_check
        %p178 = pneg %p31
      $region34: #{cnn_forward.1} parent=31 // pred_check_branch
        %180 = sbr.rel (%p178) target = $region36
      $region35: #{cnn_forward.1} parent=31 // pred_region
        %p181 = scmp.lt.s32.totalorder %s11, 1
        %s182 = scalar_select %p181, %s11, 1
        %s183 = smul.addr %s182, 32
        %s184 = smul.addr %s183, 8
        %s185 = scalar_lea.vmem %s0, %s184
      $region36: #{cnn_forward.1} parent=31 // pred_fallthru
        _
    $region32: #{cnn_forward.1} parent=5 // pred_fallthru
      _
    %p186 = scmp.le.s32.totalorder 1, %s11
    %p187 = scmp.lt.s32.totalorder %s11, 3
    %p188 = pnand %p186, %p187
    %p189 = pneg %p188
    // Predicated region
    $region37: #{cnn_forward.1} parent=5 // pred_check
      _
    $region38: #{cnn_forward.1} parent=5 // pred_check_branch
      %191 = sbr.rel (%p188) target = $region40
    $region39: #{cnn_forward.1} parent=5 // pred_region
      %s192 = ssub.s32 %s11, 1
      %p193 = scmp.lt.s32.totalorder %s16, 1
      %s194 = scalar_select %p193, %s16, 1
      %s195 = smul.addr %s194, 32
      %s196 = smul.addr %s195, 8
      %s197 = scalar_lea.vmem %s0, %s196
      %p198 = pneg %p37
      %p199 = pneg %p34
      %p200 = pneg %p58
      %p201 = pneg %p55
      %p202 = pneg %p79
      %p203 = pneg %p76
      %p204 = pneg %p100
      %p205 = pneg %p97
      %p206 = pneg %p121
      %p207 = pneg %p118
      %p208 = pneg %p147
      %p209 = pneg %p144
      %p210 = scmp.lt.s32.totalorder %s16, 1
      %s211 = scalar_select %p210, %s16, 1
      %s212 = smul.addr %s211, 2
      %s213 = smul.addr %s212, 8
      %s214 = scalar_lea.vmem %s5, %s213
      %p215 = scmp.lt.s32.totalorder %s16, 1
      %s216 = scalar_select %p215, %s16, 1
      %s217 = smul.addr %s216, 32
      %s218 = smul.addr %s217, 8
      %s219 = scalar_lea.vmem %s0, %s218
      %p220 = scmp.lt.s32.totalorder %s16, 1
      %s221 = scalar_select %p220, %s16, 1
      %s222 = smul.addr %s221, 2
      %s223 = smul.addr %s222, 8
      %s224 = scalar_lea.vmem %s5, %s223
      %v225 = vld [vmem:[%s1] sm:$0xff]
      %v226 = vld [vmem:[%s1 + $0x8] sm:$0xff]
      %v227 = vld [vmem:[%s1 + $0x10] sm:$0xff]
      %v228 = vld [vmem:[%s1 + $0x18] sm:$0xff]
      %v229 = vld [vmem:[%s219] sm:$0xff]
      %v230 = vld [vmem:[%s219 + $0x8] sm:$0xff]
      %v231 = vld [vmem:[%s219 + $0x10] sm:$0xff]
      %v232 = vld [vmem:[%s219 + $0x18] sm:$0xff]
      %v233 = vld [vmem:[%s219 + $0x20] sm:$0xff]
      %v234 = vld [vmem:[%s219 + $0x28] sm:$0xff]
      %v235 = vld [vmem:[%s219 + $0x30] sm:$0x7]
      %v236 = vld [vmem:[%s219 + $0x38] sm:$0x7]
      %vm237 = vcmask 220160
      %v239 = vsel %vm237, %v225, 0
      %v242 = vsel %vm237, %v226, 0
      %v245 = vsel %vm237, %v227, 0
      %v248 = vsel %vm237, %v228, 0
      %vm250 = vcmask 1042432
      %v252 = vsel %vm250, %v235, 0
      %v255 = vsel %vm250, %v236, 0
      %257 = vmatpush.msra.mxu0 0.0
      %258 = vmatpush.msra.mxu0 0.0
      %259 = vmatpush.msra.mxu0 0.0
      %260 = vmatpush.msra.mxu0 0.0
      %261 = vmatpush.msra.mxu0 0.0
      %262 = vmatpush.msra.mxu0 0.0
      %263 = vmatpush.msra.mxu0 0.0
      %264 = vmatpush.msra.mxu0 0.0
      %265 = vmatpush.msra.mxu0 0.0
      %266 = vmatpush.msra.mxu0 0.0
      %267 = vmatpush.msra.mxu0 0.0
      %268 = vmatpush.msra.mxu0 0.0
      %269 = vmatpush.msra.mxu0 %v252
      %270 = vmatpush.msra.mxu0 %v233
      %271 = vmatpush.msra.mxu0 %v231
      %272 = vmatpush.msra.mxu0 %v229
      %273 = vmatmul.f32.gmra.mxu0 %v239
      %v274 = vpop.f32.mrf.mxu0
      %v275 = vadd.f32 0.0, %v274
      %276 = vmatmul.f32.gmra.mxu0 %v242
      %v277 = vpop.f32.mrf.mxu0
      %v278 = vadd.f32 0.0, %v277
      %279 = vmatmul.f32.gmra.mxu0 %v245
      %v280 = vpop.f32.mrf.mxu0
      %v281 = vadd.f32 0.0, %v280
      %282 = vmatmul.f32.gmra.mxu0 %v248
      %v283 = vpop.f32.mrf.mxu0
      %v284 = vadd.f32 0.0, %v283
      %285 = vdwg.mxu0
      %286 = vmatpush.msra.mxu0 0.0
      %287 = vmatpush.msra.mxu0 0.0
      %288 = vmatpush.msra.mxu0 0.0
      %289 = vmatpush.msra.mxu0 0.0
      %290 = vmatpush.msra.mxu0 0.0
      %291 = vmatpush.msra.mxu0 0.0
      %292 = vmatpush.msra.mxu0 0.0
      %293 = vmatpush.msra.mxu0 0.0
      %294 = vmatpush.msra.mxu0 0.0
      %295 = vmatpush.msra.mxu0 0.0
      %296 = vmatpush.msra.mxu0 0.0
      %297 = vmatpush.msra.mxu0 0.0
      %298 = vmatpush.msra.mxu0 %v255
      %299 = vmatpush.msra.mxu0 %v234
      %300 = vmatpush.msra.mxu0 %v232
      %301 = vmatpush.msra.mxu0 %v230
      %302 = vmatmul.f32.gmra.mxu0 %v239
      %v303 = vpop.f32.mrf.mxu0
      %v304 = vadd.f32 0.0, %v303
      %305 = vmatmul.f32.gmra.mxu0 %v242
      %v306 = vpop.f32.mrf.mxu0
      %v307 = vadd.f32 0.0, %v306
      %308 = vmatmul.f32.gmra.mxu0 %v245
      %v309 = vpop.f32.mrf.mxu0
      %v310 = vadd.f32 0.0, %v309
      %311 = vmatmul.f32.gmra.mxu0 %v248
      %v312 = vpop.f32.mrf.mxu0
      %v313 = vadd.f32 0.0, %v312
      %314 = vdwg.mxu0
      %s315 = scalar_lea.vmem %s219, 64
      %v316 = vld [vmem:[%s315] sm:$0xff]
      %v317 = vld [vmem:[%s315 + $0x8] sm:$0xff]
      %v318 = vld [vmem:[%s315 + $0x10] sm:$0xff]
      %v319 = vld [vmem:[%s315 + $0x18] sm:$0xff]
      %v320 = vld [vmem:[%s315 + $0x20] sm:$0xff]
      %v321 = vld [vmem:[%s315 + $0x28] sm:$0xff]
      %v322 = vld [vmem:[%s315 + $0x30] sm:$0x7]
      %v323 = vld [vmem:[%s315 + $0x38] sm:$0x7]
      %v325 = vsel %vm250, %v322, 0
      %v328 = vsel %vm250, %v323, 0
      %330 = vmatpush.msra.mxu0 0.0
      %331 = vmatpush.msra.mxu0 0.0
      %332 = vmatpush.msra.mxu0 0.0
      %333 = vmatpush.msra.mxu0 0.0
      %334 = vmatpush.msra.mxu0 0.0
      %335 = vmatpush.msra.mxu0 0.0
      %336 = vmatpush.msra.mxu0 0.0
      %337 = vmatpush.msra.mxu0 0.0
      %338 = vmatpush.msra.mxu0 0.0
      %339 = vmatpush.msra.mxu0 0.0
      %340 = vmatpush.msra.mxu0 0.0
      %341 = vmatpush.msra.mxu0 0.0
      %342 = vmatpush.msra.mxu0 %v325
      %343 = vmatpush.msra.mxu0 %v320
      %344 = vmatpush.msra.mxu0 %v318
      %345 = vmatpush.msra.mxu0 %v316
      %346 = vmatmul.f32.gmra.mxu0 %v239
      %v347 = vpop.f32.mrf.mxu0
      %v348 = vadd.f32 0.0, %v347
      %349 = vmatmul.f32.gmra.mxu0 %v242
      %v350 = vpop.f32.mrf.mxu0
      %v351 = vadd.f32 0.0, %v350
      %352 = vmatmul.f32.gmra.mxu0 %v245
      %v353 = vpop.f32.mrf.mxu0
      %v354 = vadd.f32 0.0, %v353
      %355 = vmatmul.f32.gmra.mxu0 %v248
      %v356 = vpop.f32.mrf.mxu0
      %v357 = vadd.f32 0.0, %v356
      %358 = vdwg.mxu0
      %359 = vmatpush.msra.mxu0 0.0
      %360 = vmatpush.msra.mxu0 0.0
      %361 = vmatpush.msra.mxu0 0.0
      %362 = vmatpush.msra.mxu0 0.0
      %363 = vmatpush.msra.mxu0 0.0
      %364 = vmatpush.msra.mxu0 0.0
      %365 = vmatpush.msra.mxu0 0.0
      %366 = vmatpush.msra.mxu0 0.0
      %367 = vmatpush.msra.mxu0 0.0
      %368 = vmatpush.msra.mxu0 0.0
      %369 = vmatpush.msra.mxu0 0.0
      %370 = vmatpush.msra.mxu0 0.0
      %371 = vmatpush.msra.mxu0 %v328
      %372 = vmatpush.msra.mxu0 %v321
      %373 = vmatpush.msra.mxu0 %v319
      %374 = vmatpush.msra.mxu0 %v317
      %375 = vmatmul.f32.gmra.mxu0 %v239
      %v376 = vpop.f32.mrf.mxu0
      %v377 = vadd.f32 0.0, %v376
      %378 = vmatmul.f32.gmra.mxu0 %v242
      %v379 = vpop.f32.mrf.mxu0
      %v380 = vadd.f32 0.0, %v379
      %381 = vmatmul.f32.gmra.mxu0 %v245
      %v382 = vpop.f32.mrf.mxu0
      %v383 = vadd.f32 0.0, %v382
      %384 = vmatmul.f32.gmra.mxu0 %v248
      %v385 = vpop.f32.mrf.mxu0
      %v386 = vadd.f32 0.0, %v385
      %387 = vdwg.mxu0
      %v388 = vmax.f32 %v275, %v348
      %v389 = vmax.f32 %v304, %v377
      %v390 = vmax.f32 %v278, %v351
      %v391 = vmax.f32 %v307, %v380
      %v392 = vmax.f32 %v281, %v354
      %v393 = vmax.f32 %v310, %v383
      %v394 = vmax.f32 %v284, %v357
      %v395 = vmax.f32 %v313, %v386
      %s396 = scalar_lea.vmem %s219, 128
      %v397 = vld [vmem:[%s396] sm:$0xff]
      %v398 = vld [vmem:[%s396 + $0x8] sm:$0xff]
      %v399 = vld [vmem:[%s396 + $0x10] sm:$0xff]
      %v400 = vld [vmem:[%s396 + $0x18] sm:$0xff]
      %v401 = vld [vmem:[%s396 + $0x20] sm:$0xff]
      %v402 = vld [vmem:[%s396 + $0x28] sm:$0xff]
      %v403 = vld [vmem:[%s396 + $0x30] sm:$0x7]
      %v404 = vld [vmem:[%s396 + $0x38] sm:$0x7]
      %v406 = vsel %vm250, %v403, 0
      %v409 = vsel %vm250, %v404, 0
      %411 = vmatpush.msra.mxu0 0.0
      %412 = vmatpush.msra.mxu0 0.0
      %413 = vmatpush.msra.mxu0 0.0
      %414 = vmatpush.msra.mxu0 0.0
      %415 = vmatpush.msra.mxu0 0.0
      %416 = vmatpush.msra.mxu0 0.0
      %417 = vmatpush.msra.mxu0 0.0
      %418 = vmatpush.msra.mxu0 0.0
      %419 = vmatpush.msra.mxu0 0.0
      %420 = vmatpush.msra.mxu0 0.0
      %421 = vmatpush.msra.mxu0 0.0
      %422 = vmatpush.msra.mxu0 0.0
      %423 = vmatpush.msra.mxu0 %v406
      %424 = vmatpush.msra.mxu0 %v401
      %425 = vmatpush.msra.mxu0 %v399
      %426 = vmatpush.msra.mxu0 %v397
      %427 = vmatmul.f32.gmra.mxu0 %v239
      %v428 = vpop.f32.mrf.mxu0
      %v429 = vadd.f32 0.0, %v428
      %430 = vmatmul.f32.gmra.mxu0 %v242
      %v431 = vpop.f32.mrf.mxu0
      %v432 = vadd.f32 0.0, %v431
      %433 = vmatmul.f32.gmra.mxu0 %v245
      %v434 = vpop.f32.mrf.mxu0
      %v435 = vadd.f32 0.0, %v434
      %436 = vmatmul.f32.gmra.mxu0 %v248
      %v437 = vpop.f32.mrf.mxu0
      %v438 = vadd.f32 0.0, %v437
      %439 = vdwg.mxu0
      %440 = vmatpush.msra.mxu0 0.0
      %441 = vmatpush.msra.mxu0 0.0
      %442 = vmatpush.msra.mxu0 0.0
      %443 = vmatpush.msra.mxu0 0.0
      %444 = vmatpush.msra.mxu0 0.0
      %445 = vmatpush.msra.mxu0 0.0
      %446 = vmatpush.msra.mxu0 0.0
      %447 = vmatpush.msra.mxu0 0.0
      %448 = vmatpush.msra.mxu0 0.0
      %449 = vmatpush.msra.mxu0 0.0
      %450 = vmatpush.msra.mxu0 0.0
      %451 = vmatpush.msra.mxu0 0.0
      %452 = vmatpush.msra.mxu0 %v409
      %453 = vmatpush.msra.mxu0 %v402
      %454 = vmatpush.msra.mxu0 %v400
      %455 = vmatpush.msra.mxu0 %v398
      %456 = vmatmul.f32.gmra.mxu0 %v239
      %v457 = vpop.f32.mrf.mxu0
      %v458 = vadd.f32 0.0, %v457
      %459 = vmatmul.f32.gmra.mxu0 %v242
      %v460 = vpop.f32.mrf.mxu0
      %v461 = vadd.f32 0.0, %v460
      %462 = vmatmul.f32.gmra.mxu0 %v245
      %v463 = vpop.f32.mrf.mxu0
      %v464 = vadd.f32 0.0, %v463
      %465 = vmatmul.f32.gmra.mxu0 %v248
      %v466 = vpop.f32.mrf.mxu0
      %v467 = vadd.f32 0.0, %v466
      %468 = vdwg.mxu0
      %v469 = vmax.f32 %v388, %v429
      %v470 = vmax.f32 %v389, %v458
      %v471 = vmax.f32 %v390, %v432
      %v472 = vmax.f32 %v391, %v461
      %v473 = vmax.f32 %v392, %v435
      %v474 = vmax.f32 %v393, %v464
      %v475 = vmax.f32 %v394, %v438
      %v476 = vmax.f32 %v395, %v467
      %s477 = scalar_lea.vmem %s219, 192
      %v478 = vld [vmem:[%s477] sm:$0xff]
      %v479 = vld [vmem:[%s477 + $0x8] sm:$0xff]
      %v480 = vld [vmem:[%s477 + $0x10] sm:$0xff]
      %v481 = vld [vmem:[%s477 + $0x18] sm:$0xff]
      %v482 = vld [vmem:[%s477 + $0x20] sm:$0xff]
      %v483 = vld [vmem:[%s477 + $0x28] sm:$0xff]
      %v484 = vld [vmem:[%s477 + $0x30] sm:$0x7]
      %v485 = vld [vmem:[%s477 + $0x38] sm:$0x7]
      %v487 = vsel %vm250, %v484, 0
      %v490 = vsel %vm250, %v485, 0
      %492 = vmatpush.msra.mxu0 0.0
      %493 = vmatpush.msra.mxu0 0.0
      %494 = vmatpush.msra.mxu0 0.0
      %495 = vmatpush.msra.mxu0 0.0
      %496 = vmatpush.msra.mxu0 0.0
      %497 = vmatpush.msra.mxu0 0.0
      %498 = vmatpush.msra.mxu0 0.0
      %499 = vmatpush.msra.mxu0 0.0
      %500 = vmatpush.msra.mxu0 0.0
      %501 = vmatpush.msra.mxu0 0.0
      %502 = vmatpush.msra.mxu0 0.0
      %503 = vmatpush.msra.mxu0 0.0
      %504 = vmatpush.msra.mxu0 %v487
      %505 = vmatpush.msra.mxu0 %v482
      %506 = vmatpush.msra.mxu0 %v480
      %507 = vmatpush.msra.mxu0 %v478
      %508 = vmatmul.f32.gmra.mxu0 %v239
      %v509 = vpop.f32.mrf.mxu0
      %v510 = vadd.f32 0.0, %v509
      %511 = vmatmul.f32.gmra.mxu0 %v242
      %v512 = vpop.f32.mrf.mxu0
      %v513 = vadd.f32 0.0, %v512
      %514 = vmatmul.f32.gmra.mxu0 %v245
      %v515 = vpop.f32.mrf.mxu0
      %v516 = vadd.f32 0.0, %v515
      %517 = vmatmul.f32.gmra.mxu0 %v248
      %v518 = vpop.f32.mrf.mxu0
      %v519 = vadd.f32 0.0, %v518
      %520 = vdwg.mxu0
      %521 = vmatpush.msra.mxu0 0.0
      %522 = vmatpush.msra.mxu0 0.0
      %523 = vmatpush.msra.mxu0 0.0
      %524 = vmatpush.msra.mxu0 0.0
      %525 = vmatpush.msra.mxu0 0.0
      %526 = vmatpush.msra.mxu0 0.0
      %527 = vmatpush.msra.mxu0 0.0
      %528 = vmatpush.msra.mxu0 0.0
      %529 = vmatpush.msra.mxu0 0.0
      %530 = vmatpush.msra.mxu0 0.0
      %531 = vmatpush.msra.mxu0 0.0
      %532 = vmatpush.msra.mxu0 0.0
      %533 = vmatpush.msra.mxu0 %v490
      %534 = vmatpush.msra.mxu0 %v483
      %535 = vmatpush.msra.mxu0 %v481
      %536 = vmatpush.msra.mxu0 %v479
      %537 = vmatmul.f32.gmra.mxu0 %v239
      %v538 = vpop.f32.mrf.mxu0
      %v539 = vadd.f32 0.0, %v538
      %540 = vmatmul.f32.gmra.mxu0 %v242
      %v541 = vpop.f32.mrf.mxu0
      %v542 = vadd.f32 0.0, %v541
      %543 = vmatmul.f32.gmra.mxu0 %v245
      %v544 = vpop.f32.mrf.mxu0
      %v545 = vadd.f32 0.0, %v544
      %546 = vmatmul.f32.gmra.mxu0 %v248
      %v547 = vpop.f32.mrf.mxu0
      %v548 = vadd.f32 0.0, %v547
      %549 = vdwg.mxu0
      %v550 = vmax.f32 %v469, %v510
      %v551 = vmax.f32 %v470, %v539
      %v552 = vmax.f32 %v471, %v513
      %v553 = vmax.f32 %v472, %v542
      %v554 = vmax.f32 %v473, %v516
      %v555 = vmax.f32 %v474, %v545
      %v556 = vmax.f32 %v475, %v519
      %v557 = vmax.f32 %v476, %v548
      %v558 = vld [vmem:[%s2] sm:$0xff]
      %v559 = vld [vmem:[%s2 + $0x8] sm:$0xff]
      %v560 = vld [vmem:[%s2 + $0x10] sm:$0xff]
      %v561 = vld [vmem:[%s2 + $0x18] sm:$0xff]
      %563 = vset.pattern.permute.xlu0 0
      %564 = vperm.xlu0 %563, %v558
      %v565 = vpop.permute.xlu0 %564
      %568 = vset.pattern.permute.xlu0 0
      %569 = vperm.xlu0 %568, %v559
      %v570 = vpop.permute.xlu0 %569
      %573 = vset.pattern.permute.xlu0 0
      %574 = vperm.xlu0 %573, %v560
      %v575 = vpop.permute.xlu0 %574
      %578 = vset.pattern.permute.xlu0 0
      %579 = vperm.xlu0 %578, %v561
      %v580 = vpop.permute.xlu0 %579
      %v582 = vadd.f32 %v550, %v565
      %v583 = vadd.f32 %v551, %v565
      %v584 = vadd.f32 %v552, %v570
      %v585 = vadd.f32 %v553, %v570
      %v586 = vadd.f32 %v554, %v575
      %v587 = vadd.f32 %v555, %v575
      %v588 = vadd.f32 %v556, %v580
      %v589 = vadd.f32 %v557, %v580
      %v590 = vmax.f32 %v582, 0.0
      %v591 = vmax.f32 %v583, 0.0
      %v592 = vmax.f32 %v584, 0.0
      %v593 = vmax.f32 %v585, 0.0
      %v594 = vmax.f32 %v586, 0.0
      %v595 = vmax.f32 %v587, 0.0
      %v596 = vmax.f32 %v588, 0.0
      %v597 = vmax.f32 %v589, 0.0
      %v598 = vld [vmem:[%s3] sm:$0xff]
      %v599 = vld [vmem:[%s3 + $0x8] sm:$0xff]
      %v600 = vld [vmem:[%s3 + $0x10] sm:$0xff]
      %v601 = vld [vmem:[%s3 + $0x18] sm:$0xff]
      %v602 = vld [vmem:[%s3 + $0x20] sm:$0xff]
      %v603 = vld [vmem:[%s3 + $0x28] sm:$0xff]
      %v604 = vld [vmem:[%s3 + $0x30] sm:$0xff]
      %v605 = vld [vmem:[%s3 + $0x38] sm:$0xff]
      %v606 = vld [vmem:[%s3 + $0x40] sm:$0xff]
      %v607 = vld [vmem:[%s3 + $0x48] sm:$0xff]
      %v608 = vld [vmem:[%s3 + $0x50] sm:$0xff]
      %v609 = vld [vmem:[%s3 + $0x58] sm:$0xff]
      %v610 = vld [vmem:[%s3 + $0x60] sm:$0xff]
      %v611 = vld [vmem:[%s3 + $0x68] sm:$0xff]
      %v612 = vld [vmem:[%s3 + $0x70] sm:$0xff]
      %v613 = vld [vmem:[%s3 + $0x78] sm:$0xff]
      %v614 = vld [vmem:[%s3 + $0x80] sm:$0xff]
      %v615 = vld [vmem:[%s3 + $0x88] sm:$0xff]
      %v616 = vld [vmem:[%s3 + $0x90] sm:$0xff]
      %v617 = vld [vmem:[%s3 + $0x98] sm:$0xff]
      %v618 = vld [vmem:[%s3 + $0xa0] sm:$0xff]
      %v619 = vld [vmem:[%s3 + $0xa8] sm:$0xff]
      %v620 = vld [vmem:[%s3 + $0xb0] sm:$0xff]
      %v621 = vld [vmem:[%s3 + $0xb8] sm:$0xff]
      %v622 = vld [vmem:[%s3 + $0xc0] sm:$0xff]
      %v623 = vld [vmem:[%s3 + $0xc8] sm:$0xff]
      %v624 = vld [vmem:[%s3 + $0xd0] sm:$0xff]
      %v625 = vld [vmem:[%s3 + $0xd8] sm:$0xff]
      %v626 = vld [vmem:[%s3 + $0xe0] sm:$0xff]
      %v627 = vld [vmem:[%s3 + $0xe8] sm:$0xff]
      %v628 = vld [vmem:[%s3 + $0xf0] sm:$0xff]
      %v629 = vld [vmem:[%s3 + $0xf8] sm:$0xff]
      %v630 = vld [vmem:[%s3 + $0x100] sm:$0xff]
      %v631 = vld [vmem:[%s3 + $0x108] sm:$0xff]
      %v632 = vld [vmem:[%s3 + $0x110] sm:$0xff]
      %v633 = vld [vmem:[%s3 + $0x118] sm:$0xff]
      %v634 = vld [vmem:[%s3 + $0x120] sm:$0xff]
      %v635 = vld [vmem:[%s3 + $0x128] sm:$0xff]
      %v636 = vld [vmem:[%s3 + $0x130] sm:$0xff]
      %v637 = vld [vmem:[%s3 + $0x138] sm:$0xff]
      %v638 = vld [vmem:[%s3 + $0x140] sm:$0xff]
      %v639 = vld [vmem:[%s3 + $0x148] sm:$0xff]
      %v640 = vld [vmem:[%s3 + $0x150] sm:$0xff]
      %v641 = vld [vmem:[%s3 + $0x158] sm:$0xff]
      %v642 = vld [vmem:[%s3 + $0x160] sm:$0xff]
      %v643 = vld [vmem:[%s3 + $0x168] sm:$0xff]
      %v644 = vld [vmem:[%s3 + $0x170] sm:$0xff]
      %v645 = vld [vmem:[%s3 + $0x178] sm:$0xff]
      %v646 = vld [vmem:[%s3 + $0x180] sm:$0xff]
      %v647 = vld [vmem:[%s3 + $0x188] sm:$0xff]
      %v648 = vld [vmem:[%s3 + $0x190] sm:$0xff]
      %v649 = vld [vmem:[%s3 + $0x198] sm:$0xff]
      %v650 = vld [vmem:[%s3 + $0x1a0] sm:$0xff]
      %v651 = vld [vmem:[%s3 + $0x1a8] sm:$0xff]
      %v652 = vld [vmem:[%s3 + $0x1b0] sm:$0xff]
      %v653 = vld [vmem:[%s3 + $0x1b8] sm:$0xff]
      %v654 = vld [vmem:[%s3 + $0x1c0] sm:$0xff]
      %v655 = vld [vmem:[%s3 + $0x1c8] sm:$0xff]
      %v656 = vld [vmem:[%s3 + $0x1d0] sm:$0xff]
      %v657 = vld [vmem:[%s3 + $0x1d8] sm:$0xff]
      %v658 = vld [vmem:[%s3 + $0x1e0] sm:$0xff]
      %v659 = vld [vmem:[%s3 + $0x1e8] sm:$0xff]
      %v660 = vld [vmem:[%s3 + $0x1f0] sm:$0xff]
      %v661 = vld [vmem:[%s3 + $0x1f8] sm:$0xff]
      %v662 = vld [vmem:[%s3 + $0x200] sm:$0xff]
      %v663 = vld [vmem:[%s3 + $0x208] sm:$0xff]
      %v664 = vld [vmem:[%s3 + $0x210] sm:$0xff]
      %v665 = vld [vmem:[%s3 + $0x218] sm:$0xff]
      %v666 = vld [vmem:[%s3 + $0x220] sm:$0xff]
      %v667 = vld [vmem:[%s3 + $0x228] sm:$0xff]
      %v668 = vld [vmem:[%s3 + $0x230] sm:$0xff]
      %v669 = vld [vmem:[%s3 + $0x238] sm:$0xff]
      %v670 = vld [vmem:[%s3 + $0x240] sm:$0xff]
      %v671 = vld [vmem:[%s3 + $0x248] sm:$0xff]
      %v672 = vld [vmem:[%s3 + $0x250] sm:$0xff]
      %v673 = vld [vmem:[%s3 + $0x258] sm:$0xff]
      %v674 = vld [vmem:[%s3 + $0x260] sm:$0xff]
      %v675 = vld [vmem:[%s3 + $0x268] sm:$0xff]
      %v676 = vld [vmem:[%s3 + $0x270] sm:$0xff]
      %v677 = vld [vmem:[%s3 + $0x278] sm:$0xff]
      %v678 = vmul.f32 %v598, %v590
      %v679 = vmul.f32 %v599, %v591
      %v680 = vmul.f32 %v600, %v592
      %v681 = vmul.f32 %v601, %v593
      %v682 = vmul.f32 %v602, %v594
      %v683 = vmul.f32 %v603, %v595
      %v684 = vmul.f32 %v604, %v596
      %v685 = vmul.f32 %v605, %v597
      %v686 = vmul.f32 %v606, %v590
      %v687 = vmul.f32 %v607, %v591
      %v688 = vmul.f32 %v608, %v592
      %v689 = vmul.f32 %v609, %v593
      %v690 = vmul.f32 %v610, %v594
      %v691 = vmul.f32 %v611, %v595
      %v692 = vmul.f32 %v612, %v596
      %v693 = vmul.f32 %v613, %v597
      %v694 = vmul.f32 %v614, %v590
      %v695 = vmul.f32 %v615, %v591
      %v696 = vmul.f32 %v616, %v592
      %v697 = vmul.f32 %v617, %v593
      %v698 = vmul.f32 %v618, %v594
      %v699 = vmul.f32 %v619, %v595
      %v700 = vmul.f32 %v620, %v596
      %v701 = vmul.f32 %v621, %v597
      %v702 = vmul.f32 %v622, %v590
      %v703 = vmul.f32 %v623, %v591
      %v704 = vmul.f32 %v624, %v592
      %v705 = vmul.f32 %v625, %v593
      %v706 = vmul.f32 %v626, %v594
      %v707 = vmul.f32 %v627, %v595
      %v708 = vmul.f32 %v628, %v596
      %v709 = vmul.f32 %v629, %v597
      %v710 = vmul.f32 %v630, %v590
      %v711 = vmul.f32 %v631, %v591
      %v712 = vmul.f32 %v632, %v592
      %v713 = vmul.f32 %v633, %v593
      %v714 = vmul.f32 %v634, %v594
      %v715 = vmul.f32 %v635, %v595
      %v716 = vmul.f32 %v636, %v596
      %v717 = vmul.f32 %v637, %v597
      %v718 = vmul.f32 %v638, %v590
      %v719 = vmul.f32 %v639, %v591
      %v720 = vmul.f32 %v640, %v592
      %v721 = vmul.f32 %v641, %v593
      %v722 = vmul.f32 %v642, %v594
      %v723 = vmul.f32 %v643, %v595
      %v724 = vmul.f32 %v644, %v596
      %v725 = vmul.f32 %v645, %v597
      %v726 = vmul.f32 %v646, %v590
      %v727 = vmul.f32 %v647, %v591
      %v728 = vmul.f32 %v648, %v592
      %v729 = vmul.f32 %v649, %v593
      %v730 = vmul.f32 %v650, %v594
      %v731 = vmul.f32 %v651, %v595
      %v732 = vmul.f32 %v652, %v596
      %v733 = vmul.f32 %v653, %v597
      %v734 = vmul.f32 %v654, %v590
      %v735 = vmul.f32 %v655, %v591
      %v736 = vmul.f32 %v656, %v592
      %v737 = vmul.f32 %v657, %v593
      %v738 = vmul.f32 %v658, %v594
      %v739 = vmul.f32 %v659, %v595
      %v740 = vmul.f32 %v660, %v596
      %v741 = vmul.f32 %v661, %v597
      %v742 = vmul.f32 %v662, %v590
      %v743 = vmul.f32 %v663, %v591
      %v744 = vmul.f32 %v664, %v592
      %v745 = vmul.f32 %v665, %v593
      %v746 = vmul.f32 %v666, %v594
      %v747 = vmul.f32 %v667, %v595
      %v748 = vmul.f32 %v668, %v596
      %v749 = vmul.f32 %v669, %v597
      %v750 = vmul.f32 %v670, %v590
      %v751 = vmul.f32 %v671, %v591
      %v752 = vmul.f32 %v672, %v592
      %v753 = vmul.f32 %v673, %v593
      %v754 = vmul.f32 %v674, %v594
      %v755 = vmul.f32 %v675, %v595
      %v756 = vmul.f32 %v676, %v596
      %v757 = vmul.f32 %v677, %v597
      %v758 = vadd.f32 %v678, %v679
      %759 = vadd.xlane.f32.xlu0 %v758
      %v760 = vpop.xlane.xlu0 %759
      %v761 = vadd.f32 %v680, %v681
      %762 = vadd.xlane.f32.xlu0 %v761
      %v763 = vpop.xlane.xlu0 %762
      %v764 = vadd.f32 %v682, %v683
      %765 = vadd.xlane.f32.xlu0 %v764
      %v766 = vpop.xlane.xlu0 %765
      %v767 = vadd.f32 %v684, %v685
      %768 = vadd.xlane.f32.xlu0 %v767
      %v769 = vpop.xlane.xlu0 %768
      %v770 = vadd.f32 %v686, %v687
      %771 = vadd.xlane.f32.xlu0 %v770
      %v772 = vpop.xlane.xlu0 %771
      %v773 = vadd.f32 %v688, %v689
      %774 = vadd.xlane.f32.xlu0 %v773
      %v775 = vpop.xlane.xlu0 %774
      %v776 = vadd.f32 %v690, %v691
      %777 = vadd.xlane.f32.xlu0 %v776
      %v778 = vpop.xlane.xlu0 %777
      %v779 = vadd.f32 %v692, %v693
      %780 = vadd.xlane.f32.xlu0 %v779
      %v781 = vpop.xlane.xlu0 %780
      %v782 = vadd.f32 %v694, %v695
      %783 = vadd.xlane.f32.xlu0 %v782
      %v784 = vpop.xlane.xlu0 %783
      %v785 = vadd.f32 %v696, %v697
      %786 = vadd.xlane.f32.xlu0 %v785
      %v787 = vpop.xlane.xlu0 %786
      %v788 = vadd.f32 %v698, %v699
      %789 = vadd.xlane.f32.xlu0 %v788
      %v790 = vpop.xlane.xlu0 %789
      %v791 = vadd.f32 %v700, %v701
      %792 = vadd.xlane.f32.xlu0 %v791
      %v793 = vpop.xlane.xlu0 %792
      %v794 = vadd.f32 %v702, %v703
      %795 = vadd.xlane.f32.xlu0 %v794
      %v796 = vpop.xlane.xlu0 %795
      %v797 = vadd.f32 %v704, %v705
      %798 = vadd.xlane.f32.xlu0 %v797
      %v799 = vpop.xlane.xlu0 %798
      %v800 = vadd.f32 %v706, %v707
      %801 = vadd.xlane.f32.xlu0 %v800
      %v802 = vpop.xlane.xlu0 %801
      %v803 = vadd.f32 %v708, %v709
      %804 = vadd.xlane.f32.xlu0 %v803
      %v805 = vpop.xlane.xlu0 %804
      %v806 = vadd.f32 %v710, %v711
      %807 = vadd.xlane.f32.xlu0 %v806
      %v808 = vpop.xlane.xlu0 %807
      %v809 = vadd.f32 %v712, %v713
      %810 = vadd.xlane.f32.xlu0 %v809
      %v811 = vpop.xlane.xlu0 %810
      %v812 = vadd.f32 %v714, %v715
      %813 = vadd.xlane.f32.xlu0 %v812
      %v814 = vpop.xlane.xlu0 %813
      %v815 = vadd.f32 %v716, %v717
      %816 = vadd.xlane.f32.xlu0 %v815
      %v817 = vpop.xlane.xlu0 %816
      %v818 = vadd.f32 %v718, %v719
      %819 = vadd.xlane.f32.xlu0 %v818
      %v820 = vpop.xlane.xlu0 %819
      %v821 = vadd.f32 %v720, %v721
      %822 = vadd.xlane.f32.xlu0 %v821
      %v823 = vpop.xlane.xlu0 %822
      %v824 = vadd.f32 %v722, %v723
      %825 = vadd.xlane.f32.xlu0 %v824
      %v826 = vpop.xlane.xlu0 %825
      %v827 = vadd.f32 %v724, %v725
      %828 = vadd.xlane.f32.xlu0 %v827
      %v829 = vpop.xlane.xlu0 %828
      %v830 = vadd.f32 %v726, %v727
      %831 = vadd.xlane.f32.xlu0 %v830
      %v832 = vpop.xlane.xlu0 %831
      %v833 = vadd.f32 %v728, %v729
      %834 = vadd.xlane.f32.xlu0 %v833
      %v835 = vpop.xlane.xlu0 %834
      %v836 = vadd.f32 %v730, %v731
      %837 = vadd.xlane.f32.xlu0 %v836
      %v838 = vpop.xlane.xlu0 %837
      %v839 = vadd.f32 %v732, %v733
      %840 = vadd.xlane.f32.xlu0 %v839
      %v841 = vpop.xlane.xlu0 %840
      %v842 = vadd.f32 %v734, %v735
      %843 = vadd.xlane.f32.xlu0 %v842
      %v844 = vpop.xlane.xlu0 %843
      %v845 = vadd.f32 %v736, %v737
      %846 = vadd.xlane.f32.xlu0 %v845
      %v847 = vpop.xlane.xlu0 %846
      %v848 = vadd.f32 %v738, %v739
      %849 = vadd.xlane.f32.xlu0 %v848
      %v850 = vpop.xlane.xlu0 %849
      %v851 = vadd.f32 %v740, %v741
      %852 = vadd.xlane.f32.xlu0 %v851
      %v853 = vpop.xlane.xlu0 %852
      %v854 = vadd.f32 %v742, %v743
      %855 = vadd.xlane.f32.xlu0 %v854
      %v856 = vpop.xlane.xlu0 %855
      %v857 = vadd.f32 %v744, %v745
      %858 = vadd.xlane.f32.xlu0 %v857
      %v859 = vpop.xlane.xlu0 %858
      %v860 = vadd.f32 %v746, %v747
      %861 = vadd.xlane.f32.xlu0 %v860
      %v862 = vpop.xlane.xlu0 %861
      %v863 = vadd.f32 %v748, %v749
      %864 = vadd.xlane.f32.xlu0 %v863
      %v865 = vpop.xlane.xlu0 %864
      %v866 = vadd.f32 %v750, %v751
      %867 = vadd.xlane.f32.xlu0 %v866
      %v868 = vpop.xlane.xlu0 %867
      %v869 = vadd.f32 %v752, %v753
      %870 = vadd.xlane.f32.xlu0 %v869
      %v871 = vpop.xlane.xlu0 %870
      %v872 = vadd.f32 %v754, %v755
      %873 = vadd.xlane.f32.xlu0 %v872
      %v874 = vpop.xlane.xlu0 %873
      %v875 = vadd.f32 %v756, %v757
      %876 = vadd.xlane.f32.xlu0 %v875
      %v877 = vpop.xlane.xlu0 %876
      %v918 = vlaneseq
      %v919 = vand.u32 %v918, 127
      %v920 = vperm.slane %v760, %v919
      %v921 = vadd.s32 %v919, 4294967288
      %v922 = vperm.slane %v763, %v921
      %vm923 = vcmask 130112
      %v924 = vsel %vm923, %v922, %v920
      %v925 = vadd.s32 %v919, 4294967280
      %v926 = vperm.slane %v766, %v925
      %vm927 = vcmask 195712
      %v928 = vsel %vm927, %v926, %v924
      %v929 = vadd.s32 %v919, 4294967272
      %v930 = vperm.slane %v769, %v929
      %vm931 = vcmask 261312
      %v932 = vsel %vm931, %v930, %v928
      %v933 = vperm.slane %v772, %v919
      %v934 = vperm.slane %v775, %v921
      %v935 = vsel %vm923, %v934, %v933
      %v936 = vperm.slane %v778, %v925
      %v937 = vsel %vm927, %v936, %v935
      %v938 = vperm.slane %v781, %v929
      %v939 = vsel %vm931, %v938, %v937
      %v940 = vperm.slane %v784, %v919
      %v941 = vperm.slane %v787, %v921
      %v942 = vsel %vm923, %v941, %v940
      %v943 = vperm.slane %v790, %v925
      %v944 = vsel %vm927, %v943, %v942
      %v945 = vperm.slane %v793, %v929
      %v946 = vsel %vm931, %v945, %v944
      %v947 = vperm.slane %v796, %v919
      %v948 = vperm.slane %v799, %v921
      %v949 = vsel %vm923, %v948, %v947
      %v950 = vperm.slane %v802, %v925
      %v951 = vsel %vm927, %v950, %v949
      %v952 = vperm.slane %v805, %v929
      %v953 = vsel %vm931, %v952, %v951
      %v954 = vperm.slane %v808, %v919
      %v955 = vperm.slane %v811, %v921
      %v956 = vsel %vm923, %v955, %v954
      %v957 = vperm.slane %v814, %v925
      %v958 = vsel %vm927, %v957, %v956
      %v959 = vperm.slane %v817, %v929
      %v960 = vsel %vm931, %v959, %v958
      %v961 = vperm.slane %v820, %v919
      %v962 = vperm.slane %v823, %v921
      %v963 = vsel %vm923, %v962, %v961
      %v964 = vperm.slane %v826, %v925
      %v965 = vsel %vm927, %v964, %v963
      %v966 = vperm.slane %v829, %v929
      %v967 = vsel %vm931, %v966, %v965
      %v968 = vperm.slane %v832, %v919
      %v969 = vperm.slane %v835, %v921
      %v970 = vsel %vm923, %v969, %v968
      %v971 = vperm.slane %v838, %v925
      %v972 = vsel %vm927, %v971, %v970
      %v973 = vperm.slane %v841, %v929
      %v974 = vsel %vm931, %v973, %v972
      %v975 = vperm.slane %v844, %v919
      %v976 = vperm.slane %v847, %v921
      %v977 = vsel %vm923, %v976, %v975
      %v978 = vperm.slane %v850, %v925
      %v979 = vsel %vm927, %v978, %v977
      %v980 = vperm.slane %v853, %v929
      %v981 = vsel %vm931, %v980, %v979
      %v982 = vperm.slane %v856, %v919
      %v983 = vperm.slane %v859, %v921
      %v984 = vsel %vm923, %v983, %v982
      %v985 = vperm.slane %v862, %v925
      %v986 = vsel %vm927, %v985, %v984
      %v987 = vperm.slane %v865, %v929
      %v988 = vsel %vm931, %v987, %v986
      %v989 = vperm.slane %v868, %v919
      %v990 = vperm.slane %v871, %v921
      %v991 = vsel %vm923, %v990, %v989
      %v992 = vperm.slane %v874, %v925
      %v993 = vsel %vm927, %v992, %v991
      %v994 = vperm.slane %v877, %v929
      %v995 = vsel %vm931, %v994, %v993
      %vm996 = vcmask 1041409
      %v997 = vsel %vm996, %v939, %v932
      %vm998 = vcmask 1042434
      %v999 = vsel %vm998, %v946, %v997
      %vm1000 = vcmask 1043459
      %v1001 = vsel %vm1000, %v953, %v999
      %vm1002 = vcmask 1044484
      %v1003 = vsel %vm1002, %v960, %v1001
      %vm1004 = vcmask 1045509
      %v1005 = vsel %vm1004, %v967, %v1003
      %vm1006 = vcmask 1046534
      %v1007 = vsel %vm1006, %v974, %v1005
      %vm1008 = vcmask 1047559
      %v1009 = vsel %vm1008, %v981, %v1007
      %v1010 = vsel %vm996, %v995, %v988
      %vm1013 = vcmask 261120
      %v1014 = vsel %vm1013, %v1009, 0.0
      %1015 = vadd.xlane.f32.xlu0 %v1014
      %v1016 = vpop.xlane.xlu0 %1015
      %vm1017 = vcmask 254976
      %v1018 = vsel %vm1017, %v1010, 0.0
      %1019 = vadd.xlane.f32.xlu0 %v1018
      %v1020 = vpop.xlane.xlu0 %1019
      %v1021 = vld [vmem:[%s4] sm:$0xff]
      %v1022 = vld [vmem:[%s4 + $0x8] sm:$0x3]
      %v1023 = vadd.f32 %v1016, %v1021
      %v1024 = vadd.f32 %v1020, %v1022
      %vm1025 = vcmask 7168
      %1026 = vst.msk [vmem:[%s224] sm:$0xff] %vm1025, %v1023
      %vm1027 = vcmask 1024
      %1028 = vst.msk [vmem:[%s224 + $0x8] sm:$0x3] %vm1027, %v1024
      %p1029 = scmp.lt.s32.totalorder %s16, 1
      %s1030 = scalar_select %p1029, %s16, 1
      %s1031 = smul.addr %s1030, 2
      %s1032 = smul.addr %s1031, 8
      %s1033 = scalar_lea.vmem %s5, %s1032
      // Predicated region
      $region41: #{cnn_forward.1} parent=39 // pred_check
        %p1034 = pneg %p144
      $region42: #{cnn_forward.1} parent=39 // pred_check_branch
        %1036 = sbr.rel (%p1034) target = $region44
      $region43: #{cnn_forward.1} parent=39 // pred_region
        _
      $region44: #{cnn_forward.1} parent=39 // pred_fallthru
        _
    $region40: #{cnn_forward.1} parent=5 // pred_fallthru
      _
    %p1037 = scmp.le.s32.totalorder 2, %s11
    // Predicated region
    $region45: #{cnn_forward.1} parent=5 // pred_check
      %p1038 = pneg %p1037
    $region46: #{cnn_forward.1} parent=5 // pred_check_branch
      %1040 = sbr.rel (%p1038) target = $region48
    $region47: #{cnn_forward.1} parent=5 // pred_region
      %s1041 = ssub.s32 %s11, 2
      // Predicated region
      $region49: #{cnn_forward.1} parent=47 // pred_check
        %p1042 = pneg %p150
      $region50: #{cnn_forward.1} parent=47 // pred_check_branch
        %1044 = sbr.rel (%p1042) target = $region52
      $region51: #{cnn_forward.1} parent=47 // pred_region
        %p1045 = scmp.lt.s32.totalorder %s17, 1
        %s1046 = scalar_select %p1045, %s17, 1
        %s1047 = smul.addr %s1046, 2
        %s1048 = smul.addr %s1047, 8
        %s1049 = scalar_lea.vmem %s5, %s1048
      $region52: #{cnn_forward.1} parent=47 // pred_fallthru
        _
    $region48: #{cnn_forward.1} parent=5 // pred_fallthru
      _
  $region6: #{cnn_forward.1} parent=0 // loop_footer
    %s15 = sadd.s32 1, %s11
  $region7: #{cnn_forward.1} parent=0 // loop_footer_branch
    %10 = sbr.rel target = $region3
  $region8: #{cnn_forward.1} parent=0 // loop_exit
    _

</llo_original>
